<compile_context>
chip_gen: v7x
topology: tpu7x:2x2x1
jax: 0.10.0
libtpu: 0.0.40
codegen_flags: <defaults>
</compile_context>

<pallas_src>
import jax
import jax.numpy as jnp
from jax.experimental import pallas as pl
from jax.experimental.pallas import tpu as pltpu


def critic_kernel(xa_ref, w1_ref, b1_ref, w2_ref, b2_ref, w3_ref, b3_ref,
                  q_ref):
    # xa_ref: (d_in, bt)  -- concat([x, a]) transposed, batch in lanes
    # w1_ref: (H, d_in)   b1_ref: (H, 1)
    # w2_ref: (H, H)      b2_ref: (H, 1)
    # w3_ref: (1, H)      b3_ref: (1,) scalar in SMEM
    # q_ref : (1, bt)     -- lane-dense output row
    h1 = jnp.dot(w1_ref[...], xa_ref[...], preferred_element_type=jnp.float32)
    h1 = jax.nn.sigmoid(h1 + b1_ref[...])

    h2 = jnp.dot(w2_ref[...], h1, preferred_element_type=jnp.float32)
    h2 = jax.nn.sigmoid(h2 + b2_ref[...])

    # fc3 (out_features == 1): one-row MXU pass; keeps the H-reduction off the
    # VALU and leaves the result lane-dense.
    q = jnp.dot(w3_ref[...], h2, preferred_element_type=jnp.float32) + b3_ref[0]
    q_ref[...] = q.astype(q_ref.dtype)


def critic_forward(x, a, params, *, b_tile=8192):
    """x: (B, n_states), a: (B, n_actions) -> q: (B, 1)."""
    w1, b1, w2, b2, w3, b3 = params
    B = x.shape[0]
    H, d_in = w1.shape
    assert d_in == x.shape[1] + a.shape[1]

    # Stage activations once, feature-major (batch in lanes). This is the only
    # wrapper-side layout pass; it also fuses the concat.
    xa_t = jnp.concatenate([x, a], axis=1).T            # (d_in, B)

    # Batch tile: one block if the batch fits, otherwise b_tile lanes
    # (forced to a multiple of 128 so blocks are lane-aligned). No padding of
    # the batch — the partial tail block is handled by Pallas; its extra
    # columns are garbage but are never read (no reduction over batch and we
    # only return the first B columns).
    if B <= b_tile:
        bt = B                      # full-extent block: any size is legal
    else:
        bt = max(128, (b_tile // 128) * 128)
    n_blocks = pl.cdiv(B, bt)

    def w_spec(shape):
        # Same (only) block every grid step -> stays VMEM-resident.
        return pl.BlockSpec(shape, lambda i: (0, 0))

    q_row = pl.pallas_call(
        critic_kernel,
        out_shape=jax.ShapeDtypeStruct((1, B), jnp.float32),
        grid=(n_blocks,),
        in_specs=[
            pl.BlockSpec((d_in, bt), lambda i: (0, i)),          # xa (stream)
            w_spec((H, d_in)),                                   # w1
            w_spec((H, 1)),                                      # b1
            w_spec((H, H)),                                      # w2
            w_spec((H, 1)),                                      # b2
            w_spec((1, H)),                                      # w3 row
            pl.BlockSpec(memory_space=pltpu.MemorySpace.SMEM),   # b3 scalar
        ],
        out_specs=pl.BlockSpec((1, bt), lambda i: (0, i)),
        compiler_params=pltpu.CompilerParams(
            dimension_semantics=("parallel",)),
    )(xa_t, w1, b1, w2, b2, w3, b3)

    return q_row.reshape(B, 1)


def init_critic_params(key, n_states, n_actions, hidden_dim):
    """nn.Linear-style init (uniform +/- 1/sqrt(fan_in)).

    Weights are kept in PyTorch's (out, in) layout — exactly what the
    feature-major kernel wants (h = W @ x_t). Biases for fc1/fc2 are (H, 1)
    columns; fc3's weight is a (1, H) row and its bias a (1,) scalar (SMEM).
    """
    d_in = n_states + n_actions
    keys = jax.random.split(key, 6)

    def linear(kw, kb, fan_in, fan_out):
        bound = 1.0 / jnp.sqrt(fan_in)
        w = jax.random.uniform(kw, (fan_out, fan_in), jnp.float32, -bound, bound)
        b = jax.random.uniform(kb, (fan_out,), jnp.float32, -bound, bound)
        return w, b

    w1, b1 = linear(keys[0], keys[1], d_in, hidden_dim)
    w2, b2 = linear(keys[2], keys[3], hidden_dim, hidden_dim)
    w3, b3 = linear(keys[4], keys[5], hidden_dim, 1)
    return (w1, b1.reshape(hidden_dim, 1),
            w2, b2.reshape(hidden_dim, 1),
            w3, b3.reshape(1))


if __name__ == "__main__":
    # Small shapes consistent with the module: batch=8, n_states=12,
    # n_actions=4, critic_hidden_dim=32.
    B, N_STATES, N_ACTIONS, HIDDEN = 8, 12, 4, 32

    key = jax.random.PRNGKey(0)
    kx, ka, kp = jax.random.split(key, 3)

    x = jax.random.normal(kx, (B, N_STATES), jnp.float32)
    a = jax.random.normal(ka, (B, N_ACTIONS), jnp.float32)
    params = init_critic_params(kp, N_STATES, N_ACTIONS, HIDDEN)

    q = critic_forward(x, a, params)
    jax.block_until_ready(q)

    # Sanity check against a plain-JAX reference of the same math
    # (weights are in PyTorch (out, in) layout -> y = x @ W.T + b).
    w1, b1, w2, b2, w3, b3 = params
    cat = jnp.concatenate([x, a], axis=1)
    ref = jax.nn.sigmoid(cat @ w1.T + b1.reshape(1, -1))
    ref = jax.nn.sigmoid(ref @ w2.T + b2.reshape(1, -1))
    ref = ref @ w3.T + b3

    assert q.shape == (B, 1)
    assert jnp.allclose(q, ref, atol=1e-5, rtol=1e-5)

    print("KERNEL_OK")
</pallas_src>

<mosaic_0001>
module attributes {stable_mosaic.version = 11 : i64} {
  func.func @critic_kernel(%arg0: i32, %arg1: memref<16x8xf32, #tpu.memory_space<vmem>>, %arg2: memref<32x16xf32, #tpu.memory_space<vmem>>, %arg3: memref<32x1xf32, #tpu.memory_space<vmem>>, %arg4: memref<32x32xf32, #tpu.memory_space<vmem>>, %arg5: memref<32x1xf32, #tpu.memory_space<vmem>>, %arg6: memref<1x32xf32, #tpu.memory_space<vmem>>, %arg7: memref<1xf32, #tpu.memory_space<smem>>, %arg8: memref<1x8xf32, #tpu.memory_space<vmem>>) attributes {dimension_semantics = [#tpu.dimension_semantics<parallel>], iteration_bounds = array<i64: 1>, scalar_prefetch = 0 : i64, scratch_operands = 0 : i64, tpu.core_type = #tpu.core_type<tc>, window_params = [{transform_indices = @transform_0, window_bounds = array<i64: 16, 8>}, {pipeline_mode = #tpu.pipeline_mode<synchronous>, transform_indices = @transform_1, window_bounds = array<i64: 32, 16>}, {pipeline_mode = #tpu.pipeline_mode<synchronous>, transform_indices = @transform_2, window_bounds = array<i64: 32, 1>}, {pipeline_mode = #tpu.pipeline_mode<synchronous>, transform_indices = @transform_3, window_bounds = array<i64: 32, 32>}, {pipeline_mode = #tpu.pipeline_mode<synchronous>, transform_indices = @transform_4, window_bounds = array<i64: 32, 1>}, {pipeline_mode = #tpu.pipeline_mode<synchronous>, transform_indices = @transform_5, window_bounds = array<i64: 1, 32>}, {transform_indices = @transform_6, window_bounds = array<i64: 1>}, {transform_indices = @transform_7, window_bounds = array<i64: 1, 8>}]} {
    %c0 = arith.constant 0 : index
    %c0_0 = arith.constant 0 : index
    %0 = vector.load %arg2[%c0, %c0_0] : memref<32x16xf32, #tpu.memory_space<vmem>>, vector<32x16xf32>
    %c0_1 = arith.constant 0 : index
    %c0_2 = arith.constant 0 : index
    %1 = vector.load %arg1[%c0_1, %c0_2] : memref<16x8xf32, #tpu.memory_space<vmem>>, vector<16x8xf32>
    %cst = arith.constant dense<0.000000e+00> : vector<32x8xf32>
    %2 = tpu.matmul %0, %1, %cst {dimension_numbers = #tpu.dot_dimension_numbers<[1], [0], [0], [1], [0, 0, 1, 1], [], []>} : vector<32x16xf32>, vector<16x8xf32>, vector<32x8xf32> -> vector<32x8xf32>
    %c0_3 = arith.constant 0 : index
    %c0_4 = arith.constant 0 : index
    %3 = vector.load %arg3[%c0_3, %c0_4] : memref<32x1xf32, #tpu.memory_space<vmem>>, vector<32x1xf32>
    %4 = vector.broadcast %3 : vector<32x1xf32> to vector<32x8xf32>
    %5 = arith.addf %2, %4 : vector<32x8xf32>
    %6 = arith.negf %5 : vector<32x8xf32>
    %7 = math.exp %6 : vector<32x8xf32>
    %cst_5 = arith.constant 1.000000e+00 : f32
    %8 = vector.broadcast %cst_5 : f32 to vector<32x8xf32>
    %9 = arith.addf %8, %7 : vector<32x8xf32>
    %10 = arith.divf %8, %9 : vector<32x8xf32>
    %c0_6 = arith.constant 0 : index
    %c0_7 = arith.constant 0 : index
    %11 = vector.load %arg4[%c0_6, %c0_7] : memref<32x32xf32, #tpu.memory_space<vmem>>, vector<32x32xf32>
    %cst_8 = arith.constant dense<0.000000e+00> : vector<32x8xf32>
    %12 = tpu.matmul %11, %10, %cst_8 {dimension_numbers = #tpu.dot_dimension_numbers<[1], [0], [0], [1], [0, 0, 1, 1], [], []>} : vector<32x32xf32>, vector<32x8xf32>, vector<32x8xf32> -> vector<32x8xf32>
    %c0_9 = arith.constant 0 : index
    %c0_10 = arith.constant 0 : index
    %13 = vector.load %arg5[%c0_9, %c0_10] : memref<32x1xf32, #tpu.memory_space<vmem>>, vector<32x1xf32>
    %14 = vector.broadcast %13 : vector<32x1xf32> to vector<32x8xf32>
    %15 = arith.addf %12, %14 : vector<32x8xf32>
    %16 = arith.negf %15 : vector<32x8xf32>
    %17 = math.exp %16 : vector<32x8xf32>
    %cst_11 = arith.constant 1.000000e+00 : f32
    %18 = vector.broadcast %cst_11 : f32 to vector<32x8xf32>
    %19 = arith.addf %18, %17 : vector<32x8xf32>
    %20 = arith.divf %18, %19 : vector<32x8xf32>
    %c0_12 = arith.constant 0 : index
    %c0_13 = arith.constant 0 : index
    %21 = vector.load %arg6[%c0_12, %c0_13] : memref<1x32xf32, #tpu.memory_space<vmem>>, vector<1x32xf32>
    %cst_14 = arith.constant dense<0.000000e+00> : vector<1x8xf32>
    %22 = tpu.matmul %21, %20, %cst_14 {dimension_numbers = #tpu.dot_dimension_numbers<[1], [0], [0], [1], [0, 0, 1, 1], [], []>} : vector<1x32xf32>, vector<32x8xf32>, vector<1x8xf32> -> vector<1x8xf32>
    %c0_15 = arith.constant 0 : index
    %23 = memref.load %arg7[%c0_15] : memref<1xf32, #tpu.memory_space<smem>>
    %24 = vector.broadcast %23 : f32 to vector<1x8xf32>
    %25 = arith.addf %22, %24 : vector<1x8xf32>
    %c0_16 = arith.constant 0 : index
    %c0_17 = arith.constant 0 : index
    %26 = vector.load %arg8[%c0_16, %c0_17] : memref<1x8xf32, #tpu.memory_space<vmem>>, vector<1x8xf32>
    tpu.vector_store %arg8[%c0_16, %c0_17], %25 {strides = array<i32>} : memref<1x8xf32, #tpu.memory_space<vmem>>, vector<1x8xf32>,
    return
  }
  func.func @transform_0(%arg0: i32) -> (i32, i32) {
    %c0_i32 = arith.constant 0 : i32
    %c0_i32_0 = arith.constant 0 : i32
    return %c0_i32, %arg0 : i32, i32
  }
  func.func @transform_1(%arg0: i32) -> (i32, i32) {
    %c0_i32 = arith.constant 0 : i32
    %c0_i32_0 = arith.constant 0 : i32
    %c0_i32_1 = arith.constant 0 : i32
    return %c0_i32, %c0_i32_0 : i32, i32
  }
  func.func @transform_2(%arg0: i32) -> (i32, i32) {
    %c0_i32 = arith.constant 0 : i32
    %c0_i32_0 = arith.constant 0 : i32
    %c0_i32_1 = arith.constant 0 : i32
    return %c0_i32, %c0_i32_0 : i32, i32
  }
  func.func @transform_3(%arg0: i32) -> (i32, i32) {
    %c0_i32 = arith.constant 0 : i32
    %c0_i32_0 = arith.constant 0 : i32
    %c0_i32_1 = arith.constant 0 : i32
    return %c0_i32, %c0_i32_0 : i32, i32
  }
  func.func @transform_4(%arg0: i32) -> (i32, i32) {
    %c0_i32 = arith.constant 0 : i32
    %c0_i32_0 = arith.constant 0 : i32
    %c0_i32_1 = arith.constant 0 : i32
    return %c0_i32, %c0_i32_0 : i32, i32
  }
  func.func @transform_5(%arg0: i32) -> (i32, i32) {
    %c0_i32 = arith.constant 0 : i32
    %c0_i32_0 = arith.constant 0 : i32
    %c0_i32_1 = arith.constant 0 : i32
    return %c0_i32, %c0_i32_0 : i32, i32
  }
  func.func @transform_6(%arg0: i32) -> i32 {
    %c0_i32 = arith.constant 0 : i32
    %c0_i32_0 = arith.constant 0 : i32
    return %c0_i32 : i32
  }
  func.func @transform_7(%arg0: i32) -> (i32, i32) {
    %c0_i32 = arith.constant 0 : i32
    %c0_i32_0 = arith.constant 0 : i32
    return %c0_i32, %arg0 : i32, i32
  }
}

</mosaic_0001>

<llo_original>
// kernel: tpu_custom_call.1
$region0: #{tpu_custom_call.1}
  #allocation0 [shape = 'u32[]', space=smem, size = 0x4, offset = 0x4, fixed_abs, tag = 'smem constant byte address 0x4 - core index']
  #allocation1 [shape = 'u32[144,128]{1,0:T(1,128)}', space=vmem, size = 0x12000, scoped, tag = 'internal scratch']
  #allocation2 [shape = 'f32[1]{0:T(128)S(6)}', space=smem, size = 0x200, scoped, tag = 'scoped memory for tpu_custom_call.1']
  %s0 = inlined_call_operand.vmem [shape: f32[16,8], index: 0, kind: input, shape index: {}]
  %s1 = inlined_call_operand.vmem [shape: f32[32,16], index: 1, kind: input, shape index: {}]
  %s2 = inlined_call_operand.vmem [shape: f32[32,1], index: 2, kind: input, shape index: {}]
  %s3 = inlined_call_operand.vmem [shape: f32[32,32], index: 3, kind: input, shape index: {}]
  %s4 = inlined_call_operand.vmem [shape: f32[32,1], index: 4, kind: input, shape index: {}]
  %s5 = inlined_call_operand.vmem [shape: f32[1,32], index: 5, kind: input, shape index: {}]
  %s6 = inlined_call_operand.<no memory space> [shape: f32[1], index: 6, kind: input, shape index: {}]
  %s7 = inlined_call_operand.hbm [shape: f32[1,8], index: 7, kind: output, shape index: {}]
  %s8 = sld [smem:[#allocation0]]
  $region38: #{tpu_custom_call.1} parent=0
    _
  %s10 = ssub.s32 1, %s8
  %s11 = scalar_select 0, %s10, %s8
  %12 = sst [smem:[#allocation2]] %s6
  $region1: #{tpu_custom_call.1} parent=0
    #allocation3 [shape = 'u8[512]{0}', space=vmem, size = 0x400, scoped, tag = 'output window, operand 0, single buffered']
    #allocation4 [shape = 's32[1]{0}', space=sflag, size = 0x4, scoped, tag = 'scoped memory for tpu_custom_call.1']
    %13 = vsyncpa [#allocation4], 0
    // Predicated region
    $region2: #{tpu_custom_call.1} parent=1 // pred_check
      _
    $region3: #{tpu_custom_call.1} parent=1 // pred_check_branch
      %15 = sbr.rel (0) target = $region5
    $region4: #{tpu_custom_call.1} parent=1 // pred_region
      _
    $region5: #{tpu_custom_call.1} parent=1 // pred_fallthru
      _
    // Predicated region
    $region6: #{tpu_custom_call.1} parent=1 // pred_check
      _
    $region7: #{tpu_custom_call.1} parent=1 // pred_check_branch
      %17 = sbr.rel (0) target = $region9
    $region8: #{tpu_custom_call.1} parent=1 // pred_region
      _
    $region9: #{tpu_custom_call.1} parent=1 // pred_fallthru
      _
    // Predicated region
    $region10: #{tpu_custom_call.1} parent=1 // pred_check
      _
    $region11: #{tpu_custom_call.1} parent=1 // pred_check_branch
      %19 = sbr.rel (0) target = $region13
    $region12: #{tpu_custom_call.1} parent=1 // pred_region
      _
    $region13: #{tpu_custom_call.1} parent=1 // pred_fallthru
      _
    // Predicated region
    $region14: #{tpu_custom_call.1} parent=1 // pred_check
      _
    $region15: #{tpu_custom_call.1} parent=1 // pred_check_branch
      %21 = sbr.rel (0) target = $region17
    $region16: #{tpu_custom_call.1} parent=1 // pred_region
      _
    $region17: #{tpu_custom_call.1} parent=1 // pred_fallthru
      _
    // Predicated region
    $region18: #{tpu_custom_call.1} parent=1 // pred_check
      _
    $region19: #{tpu_custom_call.1} parent=1 // pred_check_branch
      %23 = sbr.rel (0) target = $region21
    $region20: #{tpu_custom_call.1} parent=1 // pred_region
      _
    $region21: #{tpu_custom_call.1} parent=1 // pred_fallthru
      _
    // Predicated region
    $region22: #{tpu_custom_call.1} parent=1 // pred_check
      _
    $region23: #{tpu_custom_call.1} parent=1 // pred_check_branch
      %25 = sbr.rel (0) target = $region25
    $region24: #{tpu_custom_call.1} parent=1 // pred_region
      _
    $region25: #{tpu_custom_call.1} parent=1 // pred_fallthru
      _
    // Predicated region
    $region26: #{tpu_custom_call.1} parent=1 // pred_check
      _
    $region27: #{tpu_custom_call.1} parent=1 // pred_check_branch
      %27 = sbr.rel (0) target = $region29
    $region28: #{tpu_custom_call.1} parent=1 // pred_region
      _
    $region29: #{tpu_custom_call.1} parent=1 // pred_fallthru
      _
    %v28 = vld [vmem:[%s1] sm:$0xff]
    %v29 = vld [vmem:[%s1 + $0x8] sm:$0xff]
    %v30 = vld [vmem:[%s1 + $0x10] sm:$0xff]
    %v31 = vld [vmem:[%s1 + $0x18] sm:$0xff]
    %v32 = vld [vmem:[%s0] sm:$0xff]
    %v33 = vld [vmem:[%s0 + $0x8] sm:$0xff]
    %v34 = vld [vmem:[%s2] sm:$0xff]
    %v35 = vld [vmem:[%s2 + $0x8] sm:$0xff]
    %v36 = vld [vmem:[%s2 + $0x10] sm:$0xff]
    %v37 = vld [vmem:[%s2 + $0x18] sm:$0xff]
    %39 = vset.pattern.permute.xlu0 0
    %40 = vperm.xlu0 %39, %v34
    %v41 = vpop.permute.xlu0 %40
    %44 = vset.pattern.permute.xlu0 0
    %45 = vperm.xlu0 %44, %v35
    %v46 = vpop.permute.xlu0 %45
    %49 = vset.pattern.permute.xlu0 0
    %50 = vperm.xlu0 %49, %v36
    %v51 = vpop.permute.xlu0 %50
    %54 = vset.pattern.permute.xlu0 0
    %55 = vperm.xlu0 %54, %v37
    %v56 = vpop.permute.xlu0 %55
    %vm58 = vcmask 130048
    %v60 = vsel %vm58, %v28, 0
    %v63 = vsel %vm58, %v29, 0
    %v66 = vsel %vm58, %v30, 0
    %v69 = vsel %vm58, %v31, 0
    %71 = vmatprep.subr.mxu0 0.0
    %72 = vmatpush1.msra.mxu0 %v32
    %73 = vmatprep.subr.mxu0 0.0
    %74 = vmatpush1.msra.mxu0 %v33
    %75 = vmatprep.subr.mxu0 0.0
    %76 = vmatpush1.msra.mxu0 0.0
    %77 = vmatprep.subr.mxu0 0.0
    %78 = vmatpush1.msra.mxu0 0.0
    %79 = vmatprep.subr.mxu0 0.0
    %80 = vmatpush1.msra.mxu0 0.0
    %81 = vmatprep.subr.mxu0 0.0
    %82 = vmatpush1.msra.mxu0 0.0
    %83 = vmatprep.subr.mxu0 0.0
    %84 = vmatpush1.msra.mxu0 0.0
    %85 = vmatprep.subr.mxu0 0.0
    %86 = vmatpush1.msra.mxu0 0.0
    %87 = vmatprep.subr.mxu0 0.0
    %88 = vmatpush1.msra.mxu0 0.0
    %89 = vmatprep.subr.mxu0 0.0
    %90 = vmatpush1.msra.mxu0 0.0
    %91 = vmatprep.subr.mxu0 0.0
    %92 = vmatpush1.msra.mxu0 0.0
    %93 = vmatprep.subr.mxu0 0.0
    %94 = vmatpush1.msra.mxu0 0.0
    %95 = vmatprep.subr.mxu0 0.0
    %96 = vmatpush1.msra.mxu0 0.0
    %97 = vmatprep.subr.mxu0 0.0
    %98 = vmatpush1.msra.mxu0 0.0
    %99 = vmatprep.subr.mxu0 0.0
    %100 = vmatpush1.msra.mxu0 0.0
    %101 = vmatprep.subr.mxu0 0.0
    %102 = vmatpush1.msra.mxu0 0.0
    %103 = vmatprep.subr.mxu0 0.0
    %104 = vmatpush1.msra.mxu0 0.0
    %105 = vmatprep.subr.mxu0 0.0
    %106 = vmatpush1.msra.mxu0 0.0
    %107 = vmatprep.subr.mxu0 0.0
    %108 = vmatpush1.msra.mxu0 0.0
    %109 = vmatprep.subr.mxu0 0.0
    %110 = vmatpush1.msra.mxu0 0.0
    %111 = vmatprep.subr.mxu0 0.0
    %112 = vmatpush1.msra.mxu0 0.0
    %113 = vmatprep.subr.mxu0 0.0
    %114 = vmatpush1.msra.mxu0 0.0
    %115 = vmatprep.subr.mxu0 0.0
    %116 = vmatpush1.msra.mxu0 0.0
    %117 = vmatprep.subr.mxu0 0.0
    %118 = vmatpush1.msra.mxu0 0.0
    %119 = vmatprep.subr.mxu0 0.0
    %120 = vmatpush1.msra.mxu0 0.0
    %121 = vmatprep.subr.mxu0 0.0
    %122 = vmatpush1.msra.mxu0 0.0
    %123 = vmatprep.subr.mxu0 0.0
    %124 = vmatpush1.msra.mxu0 0.0
    %125 = vmatprep.subr.mxu0 0.0
    %126 = vmatpush1.msra.mxu0 0.0
    %127 = vmatprep.subr.mxu0 0.0
    %128 = vmatpush1.msra.mxu0 0.0
    %129 = vmatprep.subr.mxu0 0.0
    %130 = vmatpush1.msra.mxu0 0.0
    %131 = vmatprep.subr.mxu0 0.0
    %132 = vmatpush1.msra.mxu0 0.0
    %133 = vmatprep.subr.mxu0 0.0
    %134 = vmatpush1.msra.mxu0 0.0
    %135 = vmatprep.mubr.f32.mxu0 0.0
    %136 = vmatmul.mubr.f32.gmra.mrb[0].mxu0 %v60
    %v137 = vpop.f32.mrb[0].mxu0
    %v138 = vadd.f32 %v41, %v137
    %v139 = vpop.f32.mrb[0].mxu0
    %140 = vmatprep.mubr.f32.mxu0 0.0
    %141 = vmatmul.mubr.f32.gmra.mrb[0].mxu0 %v63
    %v142 = vpop.f32.mrb[0].mxu0
    %v143 = vadd.f32 %v46, %v142
    %v144 = vpop.f32.mrb[0].mxu0
    %145 = vmatprep.mubr.f32.mxu0 0.0
    %146 = vmatmul.mubr.f32.gmra.mrb[0].mxu0 %v66
    %v147 = vpop.f32.mrb[0].mxu0
    %v148 = vadd.f32 %v51, %v147
    %v149 = vpop.f32.mrb[0].mxu0
    %150 = vmatprep.mubr.f32.mxu0 0.0
    %151 = vmatmul.mubr.f32.gmra.mrb[0].mxu0 %v69
    %v152 = vpop.f32.mrb[0].mxu0
    %v153 = vadd.f32 %v56, %v152
    %v154 = vpop.f32.mrb[0].mxu0
    %155 = vdwg.mxu0
    %v156 = vxor.u32 %v138, 2147483648
    %v157 = vxor.u32 %v143, 2147483648
    %v158 = vxor.u32 %v148, 2147483648
    %v159 = vxor.u32 %v153, 2147483648
    %v160 = vmul.f32 %v156, 1.442695
    %v161 = vpow.pop %v160
    %v162 = vmul.f32 %v157, 1.442695
    %v163 = vpow.pop %v162
    %v164 = vmul.f32 %v158, 1.442695
    %v165 = vpow.pop %v164
    %v166 = vmul.f32 %v159, 1.442695
    %v167 = vpow.pop %v166
    %v168 = vadd.f32 %v161, 1.0
    %v169 = vadd.f32 %v163, 1.0
    %v170 = vadd.f32 %v165, 1.0
    %v171 = vadd.f32 %v167, 1.0
    %v172 = vrcp.pop %v168
    %v173 = vmul.f32 1.0, %v172
    %v174 = vrcp.pop %v169
    %v175 = vmul.f32 1.0, %v174
    %v176 = vrcp.pop %v170
    %v177 = vmul.f32 1.0, %v176
    %v178 = vrcp.pop %v171
    %v179 = vmul.f32 1.0, %v178
    %v180 = vld [vmem:[%s3] sm:$0xff]
    %v181 = vld [vmem:[%s3 + $0x8] sm:$0xff]
    %v182 = vld [vmem:[%s3 + $0x10] sm:$0xff]
    %v183 = vld [vmem:[%s3 + $0x18] sm:$0xff]
    %v184 = vld [vmem:[%s4] sm:$0xff]
    %v185 = vld [vmem:[%s4 + $0x8] sm:$0xff]
    %v186 = vld [vmem:[%s4 + $0x10] sm:$0xff]
    %v187 = vld [vmem:[%s4 + $0x18] sm:$0xff]
    %189 = vset.pattern.permute.xlu0 0
    %190 = vperm.xlu0 %189, %v184
    %v191 = vpop.permute.xlu0 %190
    %194 = vset.pattern.permute.xlu0 0
    %195 = vperm.xlu0 %194, %v185
    %v196 = vpop.permute.xlu0 %195
    %199 = vset.pattern.permute.xlu0 0
    %200 = vperm.xlu0 %199, %v186
    %v201 = vpop.permute.xlu0 %200
    %204 = vset.pattern.permute.xlu0 0
    %205 = vperm.xlu0 %204, %v187
    %v206 = vpop.permute.xlu0 %205
    %vm208 = vcmask 261120
    %v210 = vsel %vm208, %v180, 0
    %v213 = vsel %vm208, %v181, 0
    %v216 = vsel %vm208, %v182, 0
    %v219 = vsel %vm208, %v183, 0
    %221 = vmatprep.subr.mxu0 0.0
    %222 = vmatpush1.msra.mxu0 %v173
    %223 = vmatprep.subr.mxu0 0.0
    %224 = vmatpush1.msra.mxu0 %v175
    %225 = vmatprep.subr.mxu0 0.0
    %226 = vmatpush1.msra.mxu0 %v177
    %227 = vmatprep.subr.mxu0 0.0
    %228 = vmatpush1.msra.mxu0 %v179
    %229 = vmatprep.subr.mxu0 0.0
    %230 = vmatpush1.msra.mxu0 0.0
    %231 = vmatprep.subr.mxu0 0.0
    %232 = vmatpush1.msra.mxu0 0.0
    %233 = vmatprep.subr.mxu0 0.0
    %234 = vmatpush1.msra.mxu0 0.0
    %235 = vmatprep.subr.mxu0 0.0
    %236 = vmatpush1.msra.mxu0 0.0
    %237 = vmatprep.subr.mxu0 0.0
    %238 = vmatpush1.msra.mxu0 0.0
    %239 = vmatprep.subr.mxu0 0.0
    %240 = vmatpush1.msra.mxu0 0.0
    %241 = vmatprep.subr.mxu0 0.0
    %242 = vmatpush1.msra.mxu0 0.0
    %243 = vmatprep.subr.mxu0 0.0
    %244 = vmatpush1.msra.mxu0 0.0
    %245 = vmatprep.subr.mxu0 0.0
    %246 = vmatpush1.msra.mxu0 0.0
    %247 = vmatprep.subr.mxu0 0.0
    %248 = vmatpush1.msra.mxu0 0.0
    %249 = vmatprep.subr.mxu0 0.0
    %250 = vmatpush1.msra.mxu0 0.0
    %251 = vmatprep.subr.mxu0 0.0
    %252 = vmatpush1.msra.mxu0 0.0
    %253 = vmatprep.subr.mxu0 0.0
    %254 = vmatpush1.msra.mxu0 0.0
    %255 = vmatprep.subr.mxu0 0.0
    %256 = vmatpush1.msra.mxu0 0.0
    %257 = vmatprep.subr.mxu0 0.0
    %258 = vmatpush1.msra.mxu0 0.0
    %259 = vmatprep.subr.mxu0 0.0
    %260 = vmatpush1.msra.mxu0 0.0
    %261 = vmatprep.subr.mxu0 0.0
    %262 = vmatpush1.msra.mxu0 0.0
    %263 = vmatprep.subr.mxu0 0.0
    %264 = vmatpush1.msra.mxu0 0.0
    %265 = vmatprep.subr.mxu0 0.0
    %266 = vmatpush1.msra.mxu0 0.0
    %267 = vmatprep.subr.mxu0 0.0
    %268 = vmatpush1.msra.mxu0 0.0
    %269 = vmatprep.subr.mxu0 0.0
    %270 = vmatpush1.msra.mxu0 0.0
    %271 = vmatprep.subr.mxu0 0.0
    %272 = vmatpush1.msra.mxu0 0.0
    %273 = vmatprep.subr.mxu0 0.0
    %274 = vmatpush1.msra.mxu0 0.0
    %275 = vmatprep.subr.mxu0 0.0
    %276 = vmatpush1.msra.mxu0 0.0
    %277 = vmatprep.subr.mxu0 0.0
    %278 = vmatpush1.msra.mxu0 0.0
    %279 = vmatprep.subr.mxu0 0.0
    %280 = vmatpush1.msra.mxu0 0.0
    %281 = vmatprep.subr.mxu0 0.0
    %282 = vmatpush1.msra.mxu0 0.0
    %283 = vmatprep.subr.mxu0 0.0
    %284 = vmatpush1.msra.mxu0 0.0
    %285 = vmatprep.mubr.f32.mxu0 0.0
    %286 = vmatmul.mubr.f32.gmra.mrb[0].mxu0 %v210
    %v287 = vpop.f32.mrb[0].mxu0
    %v288 = vadd.f32 %v191, %v287
    %v289 = vpop.f32.mrb[0].mxu0
    %290 = vmatprep.mubr.f32.mxu0 0.0
    %291 = vmatmul.mubr.f32.gmra.mrb[0].mxu0 %v213
    %v292 = vpop.f32.mrb[0].mxu0
    %v293 = vadd.f32 %v196, %v292
    %v294 = vpop.f32.mrb[0].mxu0
    %295 = vmatprep.mubr.f32.mxu0 0.0
    %296 = vmatmul.mubr.f32.gmra.mrb[0].mxu0 %v216
    %v297 = vpop.f32.mrb[0].mxu0
    %v298 = vadd.f32 %v201, %v297
    %v299 = vpop.f32.mrb[0].mxu0
    %300 = vmatprep.mubr.f32.mxu0 0.0
    %301 = vmatmul.mubr.f32.gmra.mrb[0].mxu0 %v219
    %v302 = vpop.f32.mrb[0].mxu0
    %v303 = vadd.f32 %v206, %v302
    %v304 = vpop.f32.mrb[0].mxu0
    %305 = vdwg.mxu0
    %v306 = vxor.u32 %v288, 2147483648
    %v307 = vxor.u32 %v293, 2147483648
    %v308 = vxor.u32 %v298, 2147483648
    %v309 = vxor.u32 %v303, 2147483648
    %v310 = vmul.f32 %v306, 1.442695
    %v311 = vpow.pop %v310
    %v312 = vmul.f32 %v307, 1.442695
    %v313 = vpow.pop %v312
    %v314 = vmul.f32 %v308, 1.442695
    %v315 = vpow.pop %v314
    %v316 = vmul.f32 %v309, 1.442695
    %v317 = vpow.pop %v316
    %v318 = vadd.f32 %v311, 1.0
    %v319 = vadd.f32 %v313, 1.0
    %v320 = vadd.f32 %v315, 1.0
    %v321 = vadd.f32 %v317, 1.0
    %v322 = vrcp.pop %v318
    %v323 = vmul.f32 1.0, %v322
    %v324 = vrcp.pop %v319
    %v325 = vmul.f32 1.0, %v324
    %v326 = vrcp.pop %v320
    %v327 = vmul.f32 1.0, %v326
    %v328 = vrcp.pop %v321
    %v329 = vmul.f32 1.0, %v328
    %v330 = vld [vmem:[%s5] sm:$0x1]
    %s331 = sld [smem:[#allocation2]]
    %v332 = vstv %s331
    %v334 = vsel %vm208, %v330, 0
    %336 = vmatprep.subr.mxu0 0.0
    %337 = vmatpush1.msra.mxu0 %v323
    %338 = vmatprep.subr.mxu0 0.0
    %339 = vmatpush1.msra.mxu0 %v325
    %340 = vmatprep.subr.mxu0 0.0
    %341 = vmatpush1.msra.mxu0 %v327
    %342 = vmatprep.subr.mxu0 0.0
    %343 = vmatpush1.msra.mxu0 %v329
    %344 = vmatprep.subr.mxu0 0.0
    %345 = vmatpush1.msra.mxu0 0.0
    %346 = vmatprep.subr.mxu0 0.0
    %347 = vmatpush1.msra.mxu0 0.0
    %348 = vmatprep.subr.mxu0 0.0
    %349 = vmatpush1.msra.mxu0 0.0
    %350 = vmatprep.subr.mxu0 0.0
    %351 = vmatpush1.msra.mxu0 0.0
    %352 = vmatprep.subr.mxu0 0.0
    %353 = vmatpush1.msra.mxu0 0.0
    %354 = vmatprep.subr.mxu0 0.0
    %355 = vmatpush1.msra.mxu0 0.0
    %356 = vmatprep.subr.mxu0 0.0
    %357 = vmatpush1.msra.mxu0 0.0
    %358 = vmatprep.subr.mxu0 0.0
    %359 = vmatpush1.msra.mxu0 0.0
    %360 = vmatprep.subr.mxu0 0.0
    %361 = vmatpush1.msra.mxu0 0.0
    %362 = vmatprep.subr.mxu0 0.0
    %363 = vmatpush1.msra.mxu0 0.0
    %364 = vmatprep.subr.mxu0 0.0
    %365 = vmatpush1.msra.mxu0 0.0
    %366 = vmatprep.subr.mxu0 0.0
    %367 = vmatpush1.msra.mxu0 0.0
    %368 = vmatprep.subr.mxu0 0.0
    %369 = vmatpush1.msra.mxu0 0.0
    %370 = vmatprep.subr.mxu0 0.0
    %371 = vmatpush1.msra.mxu0 0.0
    %372 = vmatprep.subr.mxu0 0.0
    %373 = vmatpush1.msra.mxu0 0.0
    %374 = vmatprep.subr.mxu0 0.0
    %375 = vmatpush1.msra.mxu0 0.0
    %376 = vmatprep.subr.mxu0 0.0
    %377 = vmatpush1.msra.mxu0 0.0
    %378 = vmatprep.subr.mxu0 0.0
    %379 = vmatpush1.msra.mxu0 0.0
    %380 = vmatprep.subr.mxu0 0.0
    %381 = vmatpush1.msra.mxu0 0.0
    %382 = vmatprep.subr.mxu0 0.0
    %383 = vmatpush1.msra.mxu0 0.0
    %384 = vmatprep.subr.mxu0 0.0
    %385 = vmatpush1.msra.mxu0 0.0
    %386 = vmatprep.subr.mxu0 0.0
    %387 = vmatpush1.msra.mxu0 0.0
    %388 = vmatprep.subr.mxu0 0.0
    %389 = vmatpush1.msra.mxu0 0.0
    %390 = vmatprep.subr.mxu0 0.0
    %391 = vmatpush1.msra.mxu0 0.0
    %392 = vmatprep.subr.mxu0 0.0
    %393 = vmatpush1.msra.mxu0 0.0
    %394 = vmatprep.subr.mxu0 0.0
    %395 = vmatpush1.msra.mxu0 0.0
    %396 = vmatprep.subr.mxu0 0.0
    %397 = vmatpush1.msra.mxu0 0.0
    %398 = vmatprep.subr.mxu0 0.0
    %399 = vmatpush1.msra.mxu0 0.0
    %400 = vmatprep.mubr.f32.mxu0 0.0
    %401 = vmatmul.mubr.f32.gmra.mrb[0].mxu0 %v334
    %v402 = vpop.f32.mrb[0].mxu0
    %v403 = vadd.f32 %v332, %v402
    %v404 = vpop.f32.mrb[0].mxu0
    %405 = vdwg.mxu0
    %vm406 = vcmask 57344
    %407 = vst.msk [vmem:[#allocation3] sm:$0x1] %vm406, %v403
    // Predicated region
    $region30: #{tpu_custom_call.1} parent=1 // pred_check
      _
    $region31: #{tpu_custom_call.1} parent=1 // pred_check_branch
      %409 = sbr.rel (0) target = $region33
    $region32: #{tpu_custom_call.1} parent=1 // pred_region
      %s411 = ssub.s32 16, 16
      %412 = vsyncadd [#allocation4], %s411
      %s414 = sshll.u32 [#allocation3], 4
      %s415 = int_to_ptr.vmem [resolvable:$true] %s414
      %417 = dma.vmem_to_hbm [thread:$0]  %s415, 16, %s7, [#allocation4]
    $region33: #{tpu_custom_call.1} parent=1 // pred_fallthru
      _
    // Predicated region
    $region34: #{tpu_custom_call.1} parent=1 // pred_check
      _
    $region35: #{tpu_custom_call.1} parent=1 // pred_check_branch
      %419 = sbr.rel (0) target = $region37
    $region36: #{tpu_custom_call.1} parent=1 // pred_region
      %420 = dma.done [#allocation4], 16
    $region37: #{tpu_custom_call.1} parent=1 // pred_fallthru
      _
    %421 = vsyncpa [#allocation4], 1

</llo_original>
